<compile_context>
chip_gen: v7x
topology: tpu7x:2x2x1
jax: 0.10.0
libtpu: 0.0.40
codegen_flags: <defaults>
</compile_context>

<pallas_src>
import functools

import numpy as np
import jax
import jax.numpy as jnp
from jax.experimental import pallas as pl
from jax.experimental.pallas import tpu as pltpu


# ----------------------------------------------------------------------------
# Deterministic Gaussian taps (replicates scipy.ndimage.gaussian_filter applied
# to a centered delta with truncate=4.0, mode='reflect').  The resulting 2D
# kernel is exactly outer(g, g) with g the 1D blurred delta, so the blur is
# separable.
# ----------------------------------------------------------------------------
def _gaussian_taps_1d(kernel_size: int) -> np.ndarray:
    assert kernel_size % 2 != 0
    sigma = 0.3 * ((kernel_size - 1) * 0.5 - 1) + 0.8
    radius = int(4.0 * sigma + 0.5)
    xs = np.arange(-radius, radius + 1, dtype=np.float64)
    phi = np.exp(-0.5 * (xs / sigma) ** 2)
    phi /= phi.sum()

    delta = np.zeros(kernel_size, dtype=np.float64)
    delta[kernel_size // 2] = 1.0
    # scipy mode='reflect' == numpy mode='symmetric'
    dpad = np.pad(delta, (radius, radius), mode="symmetric")
    g = np.zeros(kernel_size, dtype=np.float64)
    for t in range(2 * radius + 1):
        g += phi[t] * dpad[t:t + kernel_size]
    return g


def _gaussian_blur_weights_2d(kernel_size: int) -> np.ndarray:
    g = _gaussian_taps_1d(kernel_size)
    return np.outer(g, g).astype(np.float32)


# ----------------------------------------------------------------------------
# Pallas kernel: one block of `cb` channel slices per grid step.
# Reflection padding + separable (horizontal then vertical) blur, all in-kernel.
# All slices below have static starts/sizes, so they lower to cheap shifts.
# ----------------------------------------------------------------------------
def _blur_kernel(x_ref, o_ref, *, taps, H, W):
    k = len(taps)
    p = k // 2
    x = x_ref[...].astype(jnp.float32)           # (cb, H, W)

    # ---- horizontal pass (reflect halo along W fused in) ----
    if p > 0:
        left = [x[:, :, j:j + 1] for j in range(p, 0, -1)]               # cols p..1
        right = [x[:, :, j:j + 1] for j in range(W - 2, W - 2 - p, -1)]  # cols W-2..W-1-p
        xw = jnp.concatenate(left + [x] + right, axis=2)                 # (cb, H, W + 2p)
    else:
        xw = x
    h = taps[0] * xw[:, :, 0:W]
    for t in range(1, k):
        h = h + taps[t] * xw[:, :, t:t + W]

    # ---- vertical pass (reflect halo along H fused in) ----
    if p > 0:
        top = [h[:, i:i + 1, :] for i in range(p, 0, -1)]                # rows p..1
        bot = [h[:, i:i + 1, :] for i in range(H - 2, H - 2 - p, -1)]    # rows H-2..H-1-p
        hv = jnp.concatenate(top + [h] + bot, axis=1)                    # (cb, H + 2p, W)
    else:
        hv = h
    acc = taps[0] * hv[:, 0:H, :]
    for t in range(1, k):
        acc = acc + taps[t] * hv[:, t:t + H, :]

    o_ref[...] = acc.astype(o_ref.dtype)


def _pick_channel_block(nc: int, h: int, w: int, itemsize: int,
                        budget_bytes: int = 2 * 1024 * 1024) -> int:
    """Largest channel block that (a) divides N*C, (b) keeps one block <= ~2 MiB so the
    double-buffered in+out working set plus f32 temporaries fits scoped VMEM on all
    generations, and (c) leaves >= 2 grid steps when possible for megacore sharding."""
    divisors = [d for d in range(1, nc + 1) if nc % d == 0]
    fitting = [d for d in divisors if d * h * w * itemsize <= budget_bytes]
    if not fitting:
        # TODO(synk): add H/W strip tiling (with halo) for single slices too large for VMEM.
        return 1
    multi = [d for d in fitting if nc // d >= 2]
    return max(multi) if multi else max(fitting)


def gaussian_blur(x: jax.Array, channels: int, kernel_size: int) -> jax.Array:
    """x: (N, C, H, W). Returns blurred (N, C, H, W) with the same dtype."""
    assert x.ndim == 4, "'GaussianBlurLayer' requires a 4D tensor as input"
    assert x.shape[1] == channels, "channel mismatch"
    assert kernel_size % 2 != 0
    N, C, H, W = x.shape
    p = kernel_size // 2
    assert H > p and W > p, "reflection padding requires spatial dims > kernel_size // 2"

    nc = N * C
    xr = x.reshape(nc, H, W)                      # contiguous reshape, no data movement
    cb = _pick_channel_block(nc, H, W, x.dtype.itemsize)
    taps = tuple(float(v) for v in _gaussian_taps_1d(kernel_size))

    kernel = functools.partial(_blur_kernel, taps=taps, H=H, W=W)

    # Scoped-VMEM sizing: double-buffered in + out blocks at input dtype, plus ~6 f32-sized
    # temporaries live inside the kernel (x, padded copies, h, acc).  Clamp to the v7x
    # physical ceiling so the same wrapper is safe on every generation.
    block_elems = cb * H * W
    est_bytes = 4 * block_elems * x.dtype.itemsize + 6 * block_elems * 4
    vmem_limit = min(max(32 * 1024 * 1024, int(est_bytes * 1.5)), 64 * 1024 * 1024)

    out = pl.pallas_call(
        kernel,
        out_shape=jax.ShapeDtypeStruct((nc, H, W), x.dtype),
        grid_spec=pltpu.PrefetchScalarGridSpec(
            num_scalar_prefetch=0,
            grid=(nc // cb,),
            in_specs=[pl.BlockSpec((cb, H, W), lambda i: (i, 0, 0))],
            out_specs=pl.BlockSpec((cb, H, W), lambda i: (i, 0, 0)),
        ),
        compiler_params=pltpu.CompilerParams(
            dimension_semantics=("parallel",),
            vmem_limit_bytes=vmem_limit,
        ),
    )(xr)

    return out.reshape(N, C, H, W)


# ----------------------------------------------------------------------------
# Reference (pure numpy, full 2D kernel) — validates the fused-pad separable
# Pallas kernel against the original "pad then 2D depthwise conv" construction.
# ----------------------------------------------------------------------------
def _reference_blur(x: np.ndarray, kernel_size: int) -> np.ndarray:
    N, C, H, W = x.shape
    p = kernel_size // 2
    w2d = _gaussian_blur_weights_2d(kernel_size)
    xpad = np.pad(x, ((0, 0), (0, 0), (p, p), (p, p)), mode="reflect")
    out = np.zeros_like(x)
    for di in range(kernel_size):
        for dj in range(kernel_size):
            out += w2d[di, dj] * xpad[:, :, di:di + H, dj:dj + W]
    return out


if __name__ == "__main__":
    N, C, H, W = 2, 4, 16, 16
    kernel_size = 3

    key = jax.random.PRNGKey(0)
    x = jax.random.normal(key, (N, C, H, W), dtype=jnp.float32)

    y = gaussian_blur(x, channels=C, kernel_size=kernel_size)
    y = jax.block_until_ready(y)

    y_ref = _reference_blur(np.asarray(x), kernel_size)
    np.testing.assert_allclose(np.asarray(y), y_ref, rtol=1e-5, atol=1e-5)

    print("KERNEL_OK")
</pallas_src>

<mosaic_0001>
module attributes {stable_mosaic.version = 11 : i64} {
  func.func @_blur_kernel(%arg0: i32, %arg1: memref<4x16x16xf32, #tpu.memory_space<vmem>>, %arg2: memref<4x16x16xf32, #tpu.memory_space<vmem>>) attributes {dimension_semantics = [#tpu.dimension_semantics<parallel>], iteration_bounds = array<i64: 2>, scalar_prefetch = 0 : i64, scratch_operands = 0 : i64, tpu.core_type = #tpu.core_type<tc>, window_params = [{transform_indices = @transform_0, window_bounds = array<i64: 4, 16, 16>}, {transform_indices = @transform_1, window_bounds = array<i64: 4, 16, 16>}]} {
    %c0 = arith.constant 0 : index
    %c0_0 = arith.constant 0 : index
    %c0_1 = arith.constant 0 : index
    %0 = vector.load %arg1[%c0, %c0_0, %c0_1] : memref<4x16x16xf32, #tpu.memory_space<vmem>>, vector<4x16x16xf32>
    %1 = vector.extract_strided_slice %0 {offsets = [0, 0, 1], sizes = [4, 16, 1], strides = [1, 1, 1]} : vector<4x16x16xf32> to vector<4x16x1xf32>
    %2 = vector.extract_strided_slice %0 {offsets = [0, 0, 14], sizes = [4, 16, 1], strides = [1, 1, 1]} : vector<4x16x16xf32> to vector<4x16x1xf32>
    %3 = tpu.concatenate %1, %0, %2 in 2 : vector<4x16x1xf32>, vector<4x16x16xf32>, vector<4x16x1xf32> -> vector<4x16x18xf32>
    %4 = vector.extract_strided_slice %3 {offsets = [0, 0, 0], sizes = [4, 16, 16], strides = [1, 1, 1]} : vector<4x16x18xf32> to vector<4x16x16xf32>
    %cst = arith.constant 0.250221044 : f32
    %5 = vector.broadcast %cst : f32 to vector<4x16x16xf32>
    %6 = arith.mulf %5, %4 : vector<4x16x16xf32>
    %7 = vector.extract_strided_slice %3 {offsets = [0, 0, 1], sizes = [4, 16, 16], strides = [1, 1, 1]} : vector<4x16x18xf32> to vector<4x16x16xf32>
    %cst_2 = arith.constant 0.499557942 : f32
    %8 = vector.broadcast %cst_2 : f32 to vector<4x16x16xf32>
    %9 = arith.mulf %8, %7 : vector<4x16x16xf32>
    %10 = arith.addf %6, %9 : vector<4x16x16xf32>
    %11 = vector.extract_strided_slice %3 {offsets = [0, 0, 2], sizes = [4, 16, 16], strides = [1, 1, 1]} : vector<4x16x18xf32> to vector<4x16x16xf32>
    %cst_3 = arith.constant 0.250221044 : f32
    %12 = vector.broadcast %cst_3 : f32 to vector<4x16x16xf32>
    %13 = arith.mulf %12, %11 : vector<4x16x16xf32>
    %14 = arith.addf %10, %13 : vector<4x16x16xf32>
    %15 = vector.extract_strided_slice %14 {offsets = [0, 1, 0], sizes = [4, 1, 16], strides = [1, 1, 1]} : vector<4x16x16xf32> to vector<4x1x16xf32>
    %16 = vector.extract_strided_slice %14 {offsets = [0, 14, 0], sizes = [4, 1, 16], strides = [1, 1, 1]} : vector<4x16x16xf32> to vector<4x1x16xf32>
    %17 = tpu.concatenate %15, %14, %16 in 1 : vector<4x1x16xf32>, vector<4x16x16xf32>, vector<4x1x16xf32> -> vector<4x18x16xf32>
    %18 = vector.extract_strided_slice %17 {offsets = [0, 0, 0], sizes = [4, 16, 16], strides = [1, 1, 1]} : vector<4x18x16xf32> to vector<4x16x16xf32>
    %cst_4 = arith.constant 0.250221044 : f32
    %19 = vector.broadcast %cst_4 : f32 to vector<4x16x16xf32>
    %20 = arith.mulf %19, %18 : vector<4x16x16xf32>
    %21 = vector.extract_strided_slice %17 {offsets = [0, 1, 0], sizes = [4, 16, 16], strides = [1, 1, 1]} : vector<4x18x16xf32> to vector<4x16x16xf32>
    %cst_5 = arith.constant 0.499557942 : f32
    %22 = vector.broadcast %cst_5 : f32 to vector<4x16x16xf32>
    %23 = arith.mulf %22, %21 : vector<4x16x16xf32>
    %24 = arith.addf %20, %23 : vector<4x16x16xf32>
    %25 = vector.extract_strided_slice %17 {offsets = [0, 2, 0], sizes = [4, 16, 16], strides = [1, 1, 1]} : vector<4x18x16xf32> to vector<4x16x16xf32>
    %cst_6 = arith.constant 0.250221044 : f32
    %26 = vector.broadcast %cst_6 : f32 to vector<4x16x16xf32>
    %27 = arith.mulf %26, %25 : vector<4x16x16xf32>
    %28 = arith.addf %24, %27 : vector<4x16x16xf32>
    %c0_7 = arith.constant 0 : index
    %c0_8 = arith.constant 0 : index
    %c0_9 = arith.constant 0 : index
    %29 = vector.load %arg2[%c0_7, %c0_8, %c0_9] : memref<4x16x16xf32, #tpu.memory_space<vmem>>, vector<4x16x16xf32>
    tpu.vector_store %arg2[%c0_7, %c0_8, %c0_9], %28 {strides = array<i32>} : memref<4x16x16xf32, #tpu.memory_space<vmem>>, vector<4x16x16xf32>,
    return
  }
  func.func @transform_0(%arg0: i32) -> (i32, i32, i32) {
    %c0_i32 = arith.constant 0 : i32
    %c0_i32_0 = arith.constant 0 : i32
    %c0_i32_1 = arith.constant 0 : i32
    return %arg0, %c0_i32, %c0_i32_0 : i32, i32, i32
  }
  func.func @transform_1(%arg0: i32) -> (i32, i32, i32) {
    %c0_i32 = arith.constant 0 : i32
    %c0_i32_0 = arith.constant 0 : i32
    %c0_i32_1 = arith.constant 0 : i32
    return %arg0, %c0_i32, %c0_i32_0 : i32, i32, i32
  }
}

</mosaic_0001>

<llo_original>
// kernel: tpu_custom_call.1
$region0: #{tpu_custom_call.1}
  #allocation0 [shape = 'u32[]', space=smem, size = 0x4, offset = 0x4, fixed_abs, tag = 'smem constant byte address 0x4 - core index']
  #allocation1 [shape = 'u32[144,128]{1,0:T(1,128)}', space=vmem, size = 0x12000, scoped, tag = 'internal scratch']
  %s0 = inlined_call_operand.hbm [shape: f32[8,16,16], index: 0, kind: input, shape index: {}]
  %s1 = inlined_call_operand.hbm [shape: f32[8,16,16], index: 1, kind: output, shape index: {}]
  %s2 = sld [smem:[#allocation0]]
  $region41: #{tpu_custom_call.1} parent=0
    _
  %s4 = ssub.s32 1, %s2
  %s5 = scalar_select 0, %s4, %s2
  $region1: #{tpu_custom_call.1} parent=0
    #allocation2 [shape = 'u8[65536]{0}', space=vmem, size = 0x10000, scoped, tag = 'input window, operand 0']
    #allocation3 [shape = 's32[2]{0}', space=sflag, size = 0x8, scoped, tag = 'scoped memory for tpu_custom_call.1']
    #allocation4 [shape = 's32[2]{0}', space=sflag, size = 0x8, scoped, tag = 'scoped memory for tpu_custom_call.1']
    #allocation5 [shape = 'u8[65536]{0}', space=vmem, size = 0x10000, scoped, tag = 'output window, operand 0']
    %6 = vsyncpa [#allocation3], 0
    %s7 = scalar_lea.sflag [#allocation3], 1
    %8 = vsyncpa %s7, 0
    %9 = vsyncpa [#allocation4], 0
    %s10 = scalar_lea.sflag [#allocation4], 1
    %11 = vsyncpa %s10, 0
    loop: start=0, step=1, limit=4
    $region2: #{tpu_custom_call.1} parent=1 // loop_pre_header
      _
    $region3: #{tpu_custom_call.1} parent=1 // loop_header
      %s13 = sphi 0, %s17
      %p14 = scmp.ge.s32.totalorder %s13, 4
      %s23 = sphi 0, %s25
      %s26 = sphi 0, %s23
      %s27 = sphi 0, %s26
      %s43 = sphi 0, %s27
      %s49 = sphi 0, %s51
      %s52 = sphi 0, %s49
      %s53 = sphi 0, %s52
      %s69 = sphi 0, %s53
    $region4: #{tpu_custom_call.1} parent=1 // loop_header_branch
      %16 = sbr.rel (%p14) target = $region8
    $region5: #{tpu_custom_call.1} parent=1 // loop_body
      %s18 = ssub.s32 %s13, 1
      %s19 = ssub.s32 %s13, 2
      %s20 = sadd.s32 %s13, 1
      %s21 = ssub.s32 %s13, %s20
      %p22 = scmp.eq.s32.totalorder %s21, 0
      %s24 = sadd.s32 %s23, 1
      %s25 = scalar_select %p22, %s23, %s24
      %p28 = pneg %p22
      %p29 = scmp.eq.s32.totalorder %s13, 1
      %p30 = por %p28, %p29
      %p31 = scmp.ne.s32.totalorder %s23, %s26
      %p32 = scmp.eq.s32.totalorder %s13, 0
      %p33 = por %p31, %p32
      %p34 = scmp.ne.s32.totalorder %s23, %s26
      %p35 = scmp.eq.s32.totalorder %s18, 1
      %p36 = por %p34, %p35
      %p37 = scmp.ne.s32.totalorder %s26, %s27
      %p38 = scmp.eq.s32.totalorder %s18, 0
      %p39 = por %p37, %p38
      %p40 = scmp.ne.s32.totalorder %s26, %s27
      %p41 = scmp.eq.s32.totalorder %s19, 1
      %p42 = por %p40, %p41
      %p44 = scmp.ne.s32.totalorder %s27, %s43
      %p45 = scmp.eq.s32.totalorder %s19, 0
      %p46 = por %p44, %p45
      %s47 = ssub.s32 %s13, %s20
      %p48 = scmp.eq.s32.totalorder %s47, 0
      %s50 = sadd.s32 %s49, 1
      %s51 = scalar_select %p48, %s49, %s50
      %p54 = pneg %p48
      %p55 = scmp.eq.s32.totalorder %s13, 1
      %p56 = por %p54, %p55
      %p57 = scmp.ne.s32.totalorder %s49, %s52
      %p58 = scmp.eq.s32.totalorder %s13, 0
      %p59 = por %p57, %p58
      %p60 = scmp.ne.s32.totalorder %s49, %s52
      %p61 = scmp.eq.s32.totalorder %s18, 1
      %p62 = por %p60, %p61
      %p63 = scmp.ne.s32.totalorder %s52, %s53
      %p64 = scmp.eq.s32.totalorder %s18, 0
      %p65 = por %p63, %p64
      %p66 = scmp.ne.s32.totalorder %s52, %s53
      %p67 = scmp.eq.s32.totalorder %s19, 1
      %p68 = por %p66, %p67
      %p70 = scmp.ne.s32.totalorder %s53, %s69
      %p71 = scmp.eq.s32.totalorder %s19, 0
      %p72 = por %p70, %p71
      %p73 = scmp.le.s32.totalorder 1, %s13
      %p74 = scmp.lt.s32.totalorder %s13, 3
      %p75 = pnand %p73, %p74
      %p76 = pneg %p75
      // Predicated region
      $region9: #{tpu_custom_call.1} parent=5 // pred_check
        _
      $region10: #{tpu_custom_call.1} parent=5 // pred_check_branch
        %78 = sbr.rel (%p75) target = $region12
      $region11: #{tpu_custom_call.1} parent=5 // pred_region
        %s79 = ssub.s32 %s13, 1
      $region12: #{tpu_custom_call.1} parent=5 // pred_fallthru
        _
      %p80 = scmp.lt.s32.totalorder %s13, 2
      // Predicated region
      $region13: #{tpu_custom_call.1} parent=5 // pred_check
        %p81 = pneg %p80
      $region14: #{tpu_custom_call.1} parent=5 // pred_check_branch
        %83 = sbr.rel (%p81) target = $region16
      $region15: #{tpu_custom_call.1} parent=5 // pred_region
        // Predicated region
        $region17: #{tpu_custom_call.1} parent=15 // pred_check
          %p84 = pneg %p33
        $region18: #{tpu_custom_call.1} parent=15 // pred_check_branch
          %86 = sbr.rel (%p84) target = $region20
        $region19: #{tpu_custom_call.1} parent=15 // pred_region
          %s87 = sand.u32 %s23, 1
          %s88 = scalar_lea.sflag [#allocation3], %s87
          %s89 = sand.u32 %s23, 1
          %s90 = smul.addr %s89, 64
          %s91 = scalar_lea.vmem [#allocation2], %s90
          %s92 = smul.u32 4, %s13
          %s94 = ssub.s32 1024, 1024
          %95 = vsyncadd %s88, %s94
          %s96 = smul.addr %s92, 2
          %s97 = smul.addr %s96, 128
          %s98 = scalar_lea.hbm %s0, %s97
          %s99 = sshll.u32 %s91, 4
          %s100 = int_to_ptr.vmem [resolvable:$true] %s99
          %105 = dma.hbm_to_vmem [thread:$0]  %s98, 1024, %s100, %s88, 128, 128, 8
        $region20: #{tpu_custom_call.1} parent=15 // pred_fallthru
          _
      $region16: #{tpu_custom_call.1} parent=5 // pred_fallthru
        _
      %p106 = scmp.le.s32.totalorder 1, %s13
      %p107 = scmp.lt.s32.totalorder %s13, 3
      %p108 = pnand %p106, %p107
      %p109 = pneg %p108
      // Predicated region
      $region21: #{tpu_custom_call.1} parent=5 // pred_check
        _
      $region22: #{tpu_custom_call.1} parent=5 // pred_check_branch
        %111 = sbr.rel (%p108) target = $region24
      $region23: #{tpu_custom_call.1} parent=5 // pred_region
        %s112 = ssub.s32 %s13, 1
        %s113 = sand.u32 %s26, 1
        %s114 = scalar_lea.sflag [#allocation3], %s113
        %s115 = sand.u32 %s26, 1
        %s116 = smul.addr %s115, 64
        %s117 = scalar_lea.vmem [#allocation2], %s116
        // Predicated region
        $region25: #{tpu_custom_call.1} parent=23 // pred_check
          %p118 = pneg %p39
        $region26: #{tpu_custom_call.1} parent=23 // pred_check_branch
          %120 = sbr.rel (%p118) target = $region28
        $region27: #{tpu_custom_call.1} parent=23 // pred_region
          %121 = dma.done %s114, 1024
        $region28: #{tpu_custom_call.1} parent=23 // pred_fallthru
          _
        %s122 = sand.u32 %s26, 1
        %s123 = scalar_lea.sflag [#allocation3], %s122
        %s124 = sand.u32 %s26, 1
        %s125 = smul.addr %s124, 64
        %s126 = scalar_lea.vmem [#allocation2], %s125
        %p127 = pneg %p39
        %p128 = pneg %p36
        %p129 = pneg %p65
        %p130 = pneg %p62
        %s131 = sand.u32 %s52, 1
        %s132 = scalar_lea.sflag [#allocation4], %s131
        %s133 = sand.u32 %s52, 1
        %s134 = smul.addr %s133, 64
        %s135 = scalar_lea.vmem [#allocation5], %s134
        %s136 = smul.u32 4, %s18
        %s137 = smul.u32 4, %s18
        %v138 = vld [vmem:[%s117] sm:$0xff]
        %v139 = vld [vmem:[%s117 + $0x8] sm:$0xff]
        %v140 = vld [vmem:[%s117 + $0x10] sm:$0xff]
        %v141 = vld [vmem:[%s117 + $0x18] sm:$0xff]
        %v142 = vld [vmem:[%s117 + $0x20] sm:$0xff]
        %v143 = vld [vmem:[%s117 + $0x28] sm:$0xff]
        %v144 = vld [vmem:[%s117 + $0x30] sm:$0xff]
        %v145 = vld [vmem:[%s117 + $0x38] sm:$0xff]
        %154 = vrot.lane.b32.xlu0 %v138, 127
        %v155 = vpop.permute.xlu0 %154
        %156 = vrot.lane.b32.xlu0 %v139, 127
        %v157 = vpop.permute.xlu0 %156
        %158 = vrot.lane.b32.xlu0 %v140, 127
        %v159 = vpop.permute.xlu0 %158
        %160 = vrot.lane.b32.xlu0 %v141, 127
        %v161 = vpop.permute.xlu0 %160
        %162 = vrot.lane.b32.xlu0 %v142, 127
        %v163 = vpop.permute.xlu0 %162
        %164 = vrot.lane.b32.xlu0 %v143, 127
        %v165 = vpop.permute.xlu0 %164
        %166 = vrot.lane.b32.xlu0 %v144, 127
        %v167 = vpop.permute.xlu0 %166
        %168 = vrot.lane.b32.xlu0 %v145, 127
        %v169 = vpop.permute.xlu0 %168
        %178 = vrot.lane.b32.xlu0 %v138, 1
        %v179 = vpop.permute.xlu0 %178
        %180 = vrot.lane.b32.xlu0 %v139, 1
        %v181 = vpop.permute.xlu0 %180
        %182 = vrot.lane.b32.xlu0 %v140, 1
        %v183 = vpop.permute.xlu0 %182
        %184 = vrot.lane.b32.xlu0 %v141, 1
        %v185 = vpop.permute.xlu0 %184
        %186 = vrot.lane.b32.xlu0 %v142, 1
        %v187 = vpop.permute.xlu0 %186
        %188 = vrot.lane.b32.xlu0 %v143, 1
        %v189 = vpop.permute.xlu0 %188
        %190 = vrot.lane.b32.xlu0 %v144, 1
        %v191 = vpop.permute.xlu0 %190
        %192 = vrot.lane.b32.xlu0 %v145, 1
        %v193 = vpop.permute.xlu0 %192
        %202 = vrot.lane.b32.xlu0 %v138, 3
        %v203 = vpop.permute.xlu0 %202
        %204 = vrot.lane.b32.xlu0 %v139, 3
        %v205 = vpop.permute.xlu0 %204
        %206 = vrot.lane.b32.xlu0 %v140, 3
        %v207 = vpop.permute.xlu0 %206
        %208 = vrot.lane.b32.xlu0 %v141, 3
        %v209 = vpop.permute.xlu0 %208
        %210 = vrot.lane.b32.xlu0 %v142, 3
        %v211 = vpop.permute.xlu0 %210
        %212 = vrot.lane.b32.xlu0 %v143, 3
        %v213 = vpop.permute.xlu0 %212
        %214 = vrot.lane.b32.xlu0 %v144, 3
        %v215 = vpop.permute.xlu0 %214
        %216 = vrot.lane.b32.xlu0 %v145, 3
        %v217 = vpop.permute.xlu0 %216
        %vm226 = vcmask 7168
        %v227 = vsel %vm226, %v155, %v179
        %v228 = vsel %vm226, %v157, %v181
        %v229 = vsel %vm226, %v159, %v183
        %v230 = vsel %vm226, %v161, %v185
        %v231 = vsel %vm226, %v163, %v187
        %v232 = vsel %vm226, %v165, %v189
        %v233 = vsel %vm226, %v167, %v191
        %v234 = vsel %vm226, %v169, %v193
        %vm235 = vcmask 138240
        %v236 = vsel %vm235, %v227, %v203
        %v237 = vsel %vm235, %v228, %v205
        %v238 = vsel %vm235, %v229, %v207
        %v239 = vsel %vm235, %v230, %v209
        %v240 = vsel %vm235, %v231, %v211
        %v241 = vsel %vm235, %v232, %v213
        %v242 = vsel %vm235, %v233, %v215
        %v243 = vsel %vm235, %v234, %v217
        %v244 = vmul.f32 %v236, 0.25022104
        %v245 = vmul.f32 %v237, 0.25022104
        %v246 = vmul.f32 %v238, 0.25022104
        %v247 = vmul.f32 %v239, 0.25022104
        %v248 = vmul.f32 %v240, 0.25022104
        %v249 = vmul.f32 %v241, 0.25022104
        %v250 = vmul.f32 %v242, 0.25022104
        %v251 = vmul.f32 %v243, 0.25022104
        %v252 = vmul.f32 %v236, 0.49955794
        %v253 = vmul.f32 %v237, 0.49955794
        %v254 = vmul.f32 %v238, 0.49955794
        %v255 = vmul.f32 %v239, 0.49955794
        %v256 = vmul.f32 %v240, 0.49955794
        %v257 = vmul.f32 %v241, 0.49955794
        %v258 = vmul.f32 %v242, 0.49955794
        %v259 = vmul.f32 %v243, 0.49955794
        %268 = vrot.lane.b32.xlu0 %v252, 127
        %v269 = vpop.permute.xlu0 %268
        %270 = vrot.lane.b32.xlu0 %v253, 127
        %v271 = vpop.permute.xlu0 %270
        %272 = vrot.lane.b32.xlu0 %v254, 127
        %v273 = vpop.permute.xlu0 %272
        %274 = vrot.lane.b32.xlu0 %v255, 127
        %v275 = vpop.permute.xlu0 %274
        %276 = vrot.lane.b32.xlu0 %v256, 127
        %v277 = vpop.permute.xlu0 %276
        %278 = vrot.lane.b32.xlu0 %v257, 127
        %v279 = vpop.permute.xlu0 %278
        %280 = vrot.lane.b32.xlu0 %v258, 127
        %v281 = vpop.permute.xlu0 %280
        %282 = vrot.lane.b32.xlu0 %v259, 127
        %v283 = vpop.permute.xlu0 %282
        %v292 = vadd.f32 %v244, %v269
        %v293 = vadd.f32 %v245, %v271
        %v294 = vadd.f32 %v246, %v273
        %v295 = vadd.f32 %v247, %v275
        %v296 = vadd.f32 %v248, %v277
        %v297 = vadd.f32 %v249, %v279
        %v298 = vadd.f32 %v250, %v281
        %v299 = vadd.f32 %v251, %v283
        %308 = vrot.lane.b32.xlu0 %v244, 126
        %v309 = vpop.permute.xlu0 %308
        %310 = vrot.lane.b32.xlu0 %v245, 126
        %v311 = vpop.permute.xlu0 %310
        %312 = vrot.lane.b32.xlu0 %v246, 126
        %v313 = vpop.permute.xlu0 %312
        %314 = vrot.lane.b32.xlu0 %v247, 126
        %v315 = vpop.permute.xlu0 %314
        %316 = vrot.lane.b32.xlu0 %v248, 126
        %v317 = vpop.permute.xlu0 %316
        %318 = vrot.lane.b32.xlu0 %v249, 126
        %v319 = vpop.permute.xlu0 %318
        %320 = vrot.lane.b32.xlu0 %v250, 126
        %v321 = vpop.permute.xlu0 %320
        %322 = vrot.lane.b32.xlu0 %v251, 126
        %v323 = vpop.permute.xlu0 %322
        %v332 = vadd.f32 %v292, %v309
        %v333 = vadd.f32 %v293, %v311
        %v334 = vadd.f32 %v294, %v313
        %v335 = vadd.f32 %v295, %v315
        %v336 = vadd.f32 %v296, %v317
        %v337 = vadd.f32 %v297, %v319
        %v338 = vadd.f32 %v298, %v321
        %v339 = vadd.f32 %v299, %v323
        %v344 = vrot.slane %v332, 1
        %v345 = vrot.slane %v334, 1
        %v346 = vrot.slane %v336, 1
        %v347 = vrot.slane %v338, 1
        %vm356 = vcmask 1040384
        %v357 = vrot.slane %v332, 7
        %v358 = vrot.slane %v333, 7
        %v359 = vsel %vm356, %v357, %v358
        %v360 = vrot.slane %v334, 7
        %v361 = vrot.slane %v335, 7
        %v362 = vsel %vm356, %v360, %v361
        %v363 = vrot.slane %v336, 7
        %v364 = vrot.slane %v337, 7
        %v365 = vsel %vm356, %v363, %v364
        %v366 = vrot.slane %v338, 7
        %v367 = vrot.slane %v339, 7
        %v368 = vsel %vm356, %v366, %v367
        %v381 = vrot.slane %v333, 5
        %v382 = vrot.slane %v335, 5
        %v383 = vrot.slane %v337, 5
        %v384 = vrot.slane %v339, 5
        %v389 = vsel %vm356, %v344, %v357
        %v390 = vsel %vm356, %v345, %v360
        %v391 = vsel %vm356, %v346, %v363
        %v392 = vsel %vm356, %v347, %v366
        %v393 = vsel %vm356, %v358, %v381
        %v394 = vsel %vm356, %v361, %v382
        %v395 = vsel %vm356, %v364, %v383
        %v396 = vsel %vm356, %v367, %v384
        %v397 = vmul.f32 %v389, 0.25022104
        %v398 = vmul.f32 %v359, 0.25022104
        %v399 = vmul.f32 %v390, 0.25022104
        %v400 = vmul.f32 %v362, 0.25022104
        %v401 = vmul.f32 %v391, 0.25022104
        %v402 = vmul.f32 %v365, 0.25022104
        %v403 = vmul.f32 %v392, 0.25022104
        %v404 = vmul.f32 %v368, 0.25022104
        %v405 = vmul.f32 %v389, 0.49955794
        %v406 = vmul.f32 %v359, 0.49955794
        %v407 = vmul.f32 %v393, 0.49955794
        %v408 = vmul.f32 %v390, 0.49955794
        %v409 = vmul.f32 %v362, 0.49955794
        %v410 = vmul.f32 %v394, 0.49955794
        %v411 = vmul.f32 %v391, 0.49955794
        %v412 = vmul.f32 %v365, 0.49955794
        %v413 = vmul.f32 %v395, 0.49955794
        %v414 = vmul.f32 %v392, 0.49955794
        %v415 = vmul.f32 %v368, 0.49955794
        %v416 = vmul.f32 %v396, 0.49955794
        %vm429 = vcmask 1046528
        %v430 = vrot.slane %v405, 1
        %v431 = vrot.slane %v406, 1
        %v432 = vsel %vm429, %v430, %v431
        %v433 = vrot.slane %v407, 1
        %v434 = vsel %vm429, %v431, %v433
        %v435 = vrot.slane %v408, 1
        %v436 = vrot.slane %v409, 1
        %v437 = vsel %vm429, %v435, %v436
        %v438 = vrot.slane %v410, 1
        %v439 = vsel %vm429, %v436, %v438
        %v440 = vrot.slane %v411, 1
        %v441 = vrot.slane %v412, 1
        %v442 = vsel %vm429, %v440, %v441
        %v443 = vrot.slane %v413, 1
        %v444 = vsel %vm429, %v441, %v443
        %v445 = vrot.slane %v414, 1
        %v446 = vrot.slane %v415, 1
        %v447 = vsel %vm429, %v445, %v446
        %v448 = vrot.slane %v416, 1
        %v449 = vsel %vm429, %v446, %v448
        %v458 = vadd.f32 %v397, %v432
        %v459 = vadd.f32 %v398, %v434
        %v460 = vadd.f32 %v399, %v437
        %v461 = vadd.f32 %v400, %v439
        %v462 = vadd.f32 %v401, %v442
        %v463 = vadd.f32 %v402, %v444
        %v464 = vadd.f32 %v403, %v447
        %v465 = vadd.f32 %v404, %v449
        %v466 = vmul.f32 %v393, 0.25022104
        %v467 = vmul.f32 %v394, 0.25022104
        %v468 = vmul.f32 %v395, 0.25022104
        %v469 = vmul.f32 %v396, 0.25022104
        %vm482 = vcmask 1045504
        %v483 = vrot.slane %v397, 2
        %v484 = vrot.slane %v398, 2
        %v485 = vsel %vm482, %v483, %v484
        %v486 = vrot.slane %v466, 2
        %v487 = vsel %vm482, %v484, %v486
        %v488 = vrot.slane %v399, 2
        %v489 = vrot.slane %v400, 2
        %v490 = vsel %vm482, %v488, %v489
        %v491 = vrot.slane %v467, 2
        %v492 = vsel %vm482, %v489, %v491
        %v493 = vrot.slane %v401, 2
        %v494 = vrot.slane %v402, 2
        %v495 = vsel %vm482, %v493, %v494
        %v496 = vrot.slane %v468, 2
        %v497 = vsel %vm482, %v494, %v496
        %v498 = vrot.slane %v403, 2
        %v499 = vrot.slane %v404, 2
        %v500 = vsel %vm482, %v498, %v499
        %v501 = vrot.slane %v469, 2
        %v502 = vsel %vm482, %v499, %v501
        %v511 = vadd.f32 %v458, %v485
        %v512 = vadd.f32 %v459, %v487
        %v513 = vadd.f32 %v460, %v490
        %v514 = vadd.f32 %v461, %v492
        %v515 = vadd.f32 %v462, %v495
        %v516 = vadd.f32 %v463, %v497
        %v517 = vadd.f32 %v464, %v500
        %v518 = vadd.f32 %v465, %v502
        %vm519 = vcmask 130048
        %520 = vst.msk [vmem:[%s135] sm:$0xff] %vm519, %v511
        %521 = vst.msk [vmem:[%s135 + $0x8] sm:$0xff] %vm519, %v512
        %522 = vst.msk [vmem:[%s135 + $0x10] sm:$0xff] %vm519, %v513
        %523 = vst.msk [vmem:[%s135 + $0x18] sm:$0xff] %vm519, %v514
        %524 = vst.msk [vmem:[%s135 + $0x20] sm:$0xff] %vm519, %v515
        %525 = vst.msk [vmem:[%s135 + $0x28] sm:$0xff] %vm519, %v516
        %526 = vst.msk [vmem:[%s135 + $0x30] sm:$0xff] %vm519, %v517
        %527 = vst.msk [vmem:[%s135 + $0x38] sm:$0xff] %vm519, %v518
        %s528 = sand.u32 %s52, 1
        %s529 = scalar_lea.sflag [#allocation4], %s528
        %s530 = sand.u32 %s52, 1
        %s531 = smul.addr %s530, 64
        %s532 = scalar_lea.vmem [#allocation5], %s531
        // Predicated region
        $region29: #{tpu_custom_call.1} parent=23 // pred_check
          %p533 = pneg %p62
        $region30: #{tpu_custom_call.1} parent=23 // pred_check_branch
          %535 = sbr.rel (%p533) target = $region32
        $region31: #{tpu_custom_call.1} parent=23 // pred_region
          %s536 = smul.u32 4, %s18
          %s538 = ssub.s32 1024, 1024
          %539 = vsyncadd %s529, %s538
          %s540 = smul.addr %s536, 2
          %s541 = smul.addr %s540, 128
          %s542 = scalar_lea.hbm %s1, %s541
          %s543 = sshll.u32 %s532, 4
          %s544 = int_to_ptr.vmem [resolvable:$true] %s543
          %549 = dma.vmem_to_hbm [thread:$0]  %s544, 1024, %s542, %s529, 128, 128, 8
        $region32: #{tpu_custom_call.1} parent=23 // pred_fallthru
          _
      $region24: #{tpu_custom_call.1} parent=5 // pred_fallthru
        _
      %p550 = scmp.le.s32.totalorder 2, %s13
      // Predicated region
      $region33: #{tpu_custom_call.1} parent=5 // pred_check
        %p551 = pneg %p550
      $region34: #{tpu_custom_call.1} parent=5 // pred_check_branch
        %553 = sbr.rel (%p551) target = $region36
      $region35: #{tpu_custom_call.1} parent=5 // pred_region
        %s554 = ssub.s32 %s13, 2
        // Predicated region
        $region37: #{tpu_custom_call.1} parent=35 // pred_check
          %p555 = pneg %p68
        $region38: #{tpu_custom_call.1} parent=35 // pred_check_branch
          %557 = sbr.rel (%p555) target = $region40
        $region39: #{tpu_custom_call.1} parent=35 // pred_region
          %s558 = sand.u32 %s53, 1
          %s559 = scalar_lea.sflag [#allocation4], %s558
          %s560 = sand.u32 %s53, 1
          %s561 = smul.addr %s560, 64
          %s562 = scalar_lea.vmem [#allocation5], %s561
          %563 = dma.done %s559, 1024
        $region40: #{tpu_custom_call.1} parent=35 // pred_fallthru
          _
      $region36: #{tpu_custom_call.1} parent=5 // pred_fallthru
        _
    $region6: #{tpu_custom_call.1} parent=1 // loop_footer
      %s17 = sadd.s32 1, %s13
    $region7: #{tpu_custom_call.1} parent=1 // loop_footer_branch
      %12 = sbr.rel target = $region3
    $region8: #{tpu_custom_call.1} parent=1 // loop_exit
      _
    %564 = vsyncpa [#allocation3], 1
    %s565 = scalar_lea.sflag [#allocation3], 1
    %566 = vsyncpa %s565, 1
    %567 = vsyncpa [#allocation4], 1
    %s568 = scalar_lea.sflag [#allocation4], 1
    %569 = vsyncpa %s568, 1

</llo_original>
